<compile_context>
chip_gen: v5e
topology: v5e:2x2
jax: 0.10.0
libtpu: 0.0.40
codegen_flags: <defaults>
</compile_context>

<pallas_src>
import jax
import jax.numpy as jnp
from jax.experimental import pallas as pl
from jax.experimental.pallas import tpu as pltpu

IN_FEATURES = 50


def fcnet16_kernel(x_ref,
                   w1_ref, b1_ref,
                   w2_ref, b2_ref,
                   w3_ref, b3_ref,
                   w4_ref, b4_ref,
                   o_ref):
    # x tile: [TILE_B, 50] — batch on sublanes, features on lanes (native MXU LHS
    # layout, no transpose of the big operand).  bf16 x goes straight to the MXU.
    x = x_ref[...]
    w1 = w1_ref[...].astype(x.dtype)   # tiny (50x32) cast; bf16 x -> bf16 MXU pass

    # layer1: 50 -> 32, ReLU  ([TILE_B,50] @ [50,32], f32 accumulation)
    h = jnp.dot(x, w1, preferred_element_type=jnp.float32) + b1_ref[...]
    h = jnp.maximum(h, 0.0)
    # TODO(synk): training-mode dropout (p=0.25) would need pltpu.prng_random_bits
    # masking; this kernel implements eval()/inference semantics (dropout = identity).

    # layer2: 32 -> 32, ReLU
    h = jnp.dot(h, w2_ref[...], preferred_element_type=jnp.float32) + b2_ref[...]
    h = jnp.maximum(h, 0.0)

    # layer3: 32 -> 16, ReLU
    h = jnp.dot(h, w3_ref[...], preferred_element_type=jnp.float32) + b3_ref[...]
    h = jnp.maximum(h, 0.0)

    # output: 16 -> 1 via VPU multiply + cross-lane reduce (avoids a degenerate
    # 1-column MXU matmul), then sigmoid with exp + approx reciprocal on the EUP.
    z = jnp.sum(h * w4_ref[...], axis=-1, keepdims=True) + b4_ref[...]   # [TILE_B, 1]
    o_ref[...] = pl.reciprocal(1.0 + jnp.exp(-z), approx=True).astype(o_ref.dtype)


def _round_up(a, m):
    return (a + m - 1) // m * m


def fcnet16_forward(x, params, *, tile_b_max=4096):
    """Fused FCNet16 forward.

    x: [B, 50] float32 or bfloat16 (bf16 halves the dominant HBM-read bytes; all
       accumulation is f32 either way).
    params: PyTorch-layout weights/biases (see init_params).
    Returns [B, 1] float32 sigmoid probabilities (matches the nn.Module output).
    For very large B on fast-HBM parts (v7x), tile_b_max=8192..16384 is supported.
    """
    B, F = x.shape
    assert F == IN_FEATURES, F

    # ---- batch tiling -------------------------------------------------------
    # tile_b must be a multiple of 128 so every block satisfies the (8,128) rule.
    tile_b_max = max(128, _round_up(tile_b_max, 128))
    tile_b = min(tile_b_max, _round_up(B, 128))
    # v7x megacore: when the whole padded batch would be a single tile and halving
    # it costs no extra padding, use two grid steps so both TensorCores get work.
    if tile_b == _round_up(B, 128) and tile_b % 256 == 0 and B > tile_b // 2:
        tile_b //= 2
    B_pad = _round_up(B, tile_b)
    if B_pad != B:
        x = jnp.pad(x, ((0, B_pad - B), (0, 0)))

    # ---- kernel-layout params (tiny host-side layout plumbing) --------------
    w1t = params["w1"].T                   # (50, 32)
    w2t = params["w2"].T                   # (32, 32)
    w3t = params["w3"].T                   # (32, 16)
    w4r = params["w4"]                     # (1, 16)  — broadcast over sublanes in-kernel
    b1r = params["b1"].reshape(1, -1)      # (1, 32)
    b2r = params["b2"].reshape(1, -1)      # (1, 32)
    b3r = params["b3"].reshape(1, -1)      # (1, 16)
    b4r = params["b4"].reshape(1, 1)       # (1, 1)

    # Full-array blocks with constant index maps -> loaded once, VMEM-resident
    # across every grid step (~7 KB total).
    resident = lambda a: pl.BlockSpec(a.shape, lambda i: (0, 0))

    out = pl.pallas_call(
        fcnet16_kernel,
        out_shape=jax.ShapeDtypeStruct((B_pad, 1), jnp.float32),
        grid=(B_pad // tile_b,),
        in_specs=[
            # Streamed x: batch on sublanes, features on lanes; double-buffered by
            # the BlockSpec pipeline.  If xprof ever shows exposed x DMA, add
            # pipeline_mode=pl.Buffered(3) here.
            pl.BlockSpec((tile_b, IN_FEATURES), lambda i: (i, 0)),
            resident(w1t), resident(b1r),
            resident(w2t), resident(b2r),
            resident(w3t), resident(b3r),
            resident(w4r), resident(b4r),
        ],
        # (tile_b, 1) output block: last dim equals the full array dim (legal), and
        # the narrow masked stores are ~2% of the x bytes -> hidden under the x DMA.
        out_specs=pl.BlockSpec((tile_b, 1), lambda i: (i, 0)),
        compiler_params=pltpu.CompilerParams(
            # Batch axis shards across both TensorCores on v7x; harmless on v5e/v6e.
            dimension_semantics=("parallel",),
            # Raise the scoped-VMEM cap so large double-buffered x tiles (plus the
            # 50->128 lane padding) fit on v5e's 16 MiB default; < v7x's 64 MiB physical.
            vmem_limit_bytes=48 * 1024 * 1024,
        ),
    )(x, w1t, b1r, w2t, b2r, w3t, b3r, w4r, b4r)

    # Back to the PyTorch [B, 1] output convention.
    return out[:B]


def init_params(key):
    """PyTorch nn.Linear default init & layout: weight (out, in), bias (out,),
    both ~ U[-1/sqrt(fan_in), +1/sqrt(fan_in)]."""
    torch_dims = [(32, 50), (32, 32), (16, 32), (1, 16)]   # (out, in)
    params = {}
    for idx, (fan_out, fan_in) in enumerate(torch_dims, start=1):
        key, kw, kb = jax.random.split(key, 3)
        bound = 1.0 / float(fan_in) ** 0.5
        params[f"w{idx}"] = jax.random.uniform(
            kw, (fan_out, fan_in), jnp.float32, -bound, bound)
        params[f"b{idx}"] = jax.random.uniform(
            kb, (fan_out,), jnp.float32, -bound, bound)
    return params


def reference_forward(x, params):
    h = jnp.maximum(x @ params["w1"].T + params["b1"], 0.0)
    h = jnp.maximum(h @ params["w2"].T + params["b2"], 0.0)
    h = jnp.maximum(h @ params["w3"].T + params["b3"], 0.0)
    z = h @ params["w4"].T + params["b4"]
    return 1.0 / (1.0 + jnp.exp(-z))


if __name__ == "__main__":
    key = jax.random.PRNGKey(0)
    key, kx = jax.random.split(key)
    params = init_params(key)

    # Small single-tile case (module interface: [B, 50]).
    B = 8
    x = jax.random.normal(kx, (B, IN_FEATURES), jnp.float32)
    out = jax.block_until_ready(fcnet16_forward(x, params))
    ref = reference_forward(x, params)
    assert out.shape == (B, 1), out.shape
    # Tolerance covers the approx-reciprocal sigmoid and f32 accumulation-order
    # differences; outputs are probabilities in (0, 1).
    assert jnp.allclose(out, ref, atol=2e-3, rtol=0), \
        float(jnp.max(jnp.abs(out - ref)))

    # Multi-tile grid (grid=3, ragged batch padded to 384) exercises the
    # batch-tiling index maps end to end.
    B2 = 300
    x2 = jax.random.normal(jax.random.PRNGKey(1), (B2, IN_FEATURES), jnp.float32)
    out2 = jax.block_until_ready(fcnet16_forward(x2, params, tile_b_max=128))
    ref2 = reference_forward(x2, params)
    assert out2.shape == (B2, 1), out2.shape
    assert jnp.allclose(out2, ref2, atol=2e-3, rtol=0), \
        float(jnp.max(jnp.abs(out2 - ref2)))

    # bf16 x is fed straight to the MXU (layer-1 weights rounded to bf16 in-kernel);
    # the reference mirrors that rounding so the check stays tight.
    x_bf16 = x.astype(jnp.bfloat16)
    params_bf = dict(params)
    params_bf["w1"] = params["w1"].astype(jnp.bfloat16).astype(jnp.float32)
    out_bf = jax.block_until_ready(fcnet16_forward(x_bf16, params))
    ref_bf = reference_forward(x_bf16.astype(jnp.float32), params_bf)
    assert jnp.allclose(out_bf, ref_bf, atol=2e-3, rtol=0), \
        float(jnp.max(jnp.abs(out_bf - ref_bf)))

    print("KERNEL_OK")
</pallas_src>

<mosaic_0001>
module attributes {stable_mosaic.version = 11 : i64} {
  func.func @fcnet16_kernel(%arg0: i32, %arg1: memref<128x50xf32, #tpu.memory_space<vmem>>, %arg2: memref<50x32xf32, #tpu.memory_space<vmem>>, %arg3: memref<1x32xf32, #tpu.memory_space<vmem>>, %arg4: memref<32x32xf32, #tpu.memory_space<vmem>>, %arg5: memref<1x32xf32, #tpu.memory_space<vmem>>, %arg6: memref<32x16xf32, #tpu.memory_space<vmem>>, %arg7: memref<1x16xf32, #tpu.memory_space<vmem>>, %arg8: memref<1x16xf32, #tpu.memory_space<vmem>>, %arg9: memref<1x1xf32, #tpu.memory_space<vmem>>, %arg10: memref<128x1xf32, #tpu.memory_space<vmem>>) attributes {dimension_semantics = [#tpu.dimension_semantics<parallel>], iteration_bounds = array<i64: 1>, scalar_prefetch = 0 : i64, scratch_operands = 0 : i64, tpu.core_type = #tpu.core_type<tc>, window_params = [{transform_indices = @transform_0, window_bounds = array<i64: 128, 50>}, {pipeline_mode = #tpu.pipeline_mode<synchronous>, transform_indices = @transform_1, window_bounds = array<i64: 50, 32>}, {pipeline_mode = #tpu.pipeline_mode<synchronous>, transform_indices = @transform_2, window_bounds = array<i64: 1, 32>}, {pipeline_mode = #tpu.pipeline_mode<synchronous>, transform_indices = @transform_3, window_bounds = array<i64: 32, 32>}, {pipeline_mode = #tpu.pipeline_mode<synchronous>, transform_indices = @transform_4, window_bounds = array<i64: 1, 32>}, {pipeline_mode = #tpu.pipeline_mode<synchronous>, transform_indices = @transform_5, window_bounds = array<i64: 32, 16>}, {pipeline_mode = #tpu.pipeline_mode<synchronous>, transform_indices = @transform_6, window_bounds = array<i64: 1, 16>}, {pipeline_mode = #tpu.pipeline_mode<synchronous>, transform_indices = @transform_7, window_bounds = array<i64: 1, 16>}, {pipeline_mode = #tpu.pipeline_mode<synchronous>, transform_indices = @transform_8, window_bounds = array<i64: 1, 1>}, {transform_indices = @transform_9, window_bounds = array<i64: 128, 1>}]} {
    %c0 = arith.constant 0 : index
    %c0_0 = arith.constant 0 : index
    %0 = vector.load %arg1[%c0, %c0_0] : memref<128x50xf32, #tpu.memory_space<vmem>>, vector<128x50xf32>
    %c0_1 = arith.constant 0 : index
    %c0_2 = arith.constant 0 : index
    %1 = vector.load %arg2[%c0_1, %c0_2] : memref<50x32xf32, #tpu.memory_space<vmem>>, vector<50x32xf32>
    %cst = arith.constant dense<0.000000e+00> : vector<128x32xf32>
    %2 = tpu.matmul %0, %1, %cst {dimension_numbers = #tpu.dot_dimension_numbers<[1], [0], [0], [1], [0, 0, 1, 1], [], []>} : vector<128x50xf32>, vector<50x32xf32>, vector<128x32xf32> -> vector<128x32xf32>
    %c0_3 = arith.constant 0 : index
    %c0_4 = arith.constant 0 : index
    %3 = vector.load %arg3[%c0_3, %c0_4] : memref<1x32xf32, #tpu.memory_space<vmem>>, vector<1x32xf32>
    %4 = vector.broadcast %3 : vector<1x32xf32> to vector<128x32xf32>
    %5 = arith.addf %2, %4 : vector<128x32xf32>
    %cst_5 = arith.constant 0.000000e+00 : f32
    %6 = vector.broadcast %cst_5 : f32 to vector<128x32xf32>
    %7 = arith.maximumf %5, %6 : vector<128x32xf32>
    %c0_6 = arith.constant 0 : index
    %c0_7 = arith.constant 0 : index
    %8 = vector.load %arg4[%c0_6, %c0_7] : memref<32x32xf32, #tpu.memory_space<vmem>>, vector<32x32xf32>
    %cst_8 = arith.constant dense<0.000000e+00> : vector<128x32xf32>
    %9 = tpu.matmul %7, %8, %cst_8 {dimension_numbers = #tpu.dot_dimension_numbers<[1], [0], [0], [1], [0, 0, 1, 1], [], []>} : vector<128x32xf32>, vector<32x32xf32>, vector<128x32xf32> -> vector<128x32xf32>
    %c0_9 = arith.constant 0 : index
    %c0_10 = arith.constant 0 : index
    %10 = vector.load %arg5[%c0_9, %c0_10] : memref<1x32xf32, #tpu.memory_space<vmem>>, vector<1x32xf32>
    %11 = vector.broadcast %10 : vector<1x32xf32> to vector<128x32xf32>
    %12 = arith.addf %9, %11 : vector<128x32xf32>
    %cst_11 = arith.constant 0.000000e+00 : f32
    %13 = vector.broadcast %cst_11 : f32 to vector<128x32xf32>
    %14 = arith.maximumf %12, %13 : vector<128x32xf32>
    %c0_12 = arith.constant 0 : index
    %c0_13 = arith.constant 0 : index
    %15 = vector.load %arg6[%c0_12, %c0_13] : memref<32x16xf32, #tpu.memory_space<vmem>>, vector<32x16xf32>
    %cst_14 = arith.constant dense<0.000000e+00> : vector<128x16xf32>
    %16 = tpu.matmul %14, %15, %cst_14 {dimension_numbers = #tpu.dot_dimension_numbers<[1], [0], [0], [1], [0, 0, 1, 1], [], []>} : vector<128x32xf32>, vector<32x16xf32>, vector<128x16xf32> -> vector<128x16xf32>
    %c0_15 = arith.constant 0 : index
    %c0_16 = arith.constant 0 : index
    %17 = vector.load %arg7[%c0_15, %c0_16] : memref<1x16xf32, #tpu.memory_space<vmem>>, vector<1x16xf32>
    %18 = vector.broadcast %17 : vector<1x16xf32> to vector<128x16xf32>
    %19 = arith.addf %16, %18 : vector<128x16xf32>
    %cst_17 = arith.constant 0.000000e+00 : f32
    %20 = vector.broadcast %cst_17 : f32 to vector<128x16xf32>
    %21 = arith.maximumf %19, %20 : vector<128x16xf32>
    %c0_18 = arith.constant 0 : index
    %c0_19 = arith.constant 0 : index
    %22 = vector.load %arg8[%c0_18, %c0_19] : memref<1x16xf32, #tpu.memory_space<vmem>>, vector<1x16xf32>
    %23 = vector.broadcast %22 : vector<1x16xf32> to vector<128x16xf32>
    %24 = arith.mulf %21, %23 : vector<128x16xf32>
    %cst_20 = arith.constant dense<0.000000e+00> : vector<128xf32>
    %25 = vector.multi_reduction <add>, %24, %cst_20 [1] : vector<128x16xf32> to vector<128xf32>
    %26 = vector.shape_cast %25 : vector<128xf32> to vector<128x1xf32>
    %c0_21 = arith.constant 0 : index
    %c0_22 = arith.constant 0 : index
    %27 = vector.load %arg9[%c0_21, %c0_22] : memref<1x1xf32, #tpu.memory_space<vmem>>, vector<1x1xf32>
    %28 = vector.broadcast %27 : vector<1x1xf32> to vector<128x1xf32>
    %29 = arith.addf %26, %28 : vector<128x1xf32>
    %cst_23 = arith.constant 0.000000e+00 : f32
    %30 = vector.broadcast %cst_23 : f32 to vector<128x1xf32>
    %31 = arith.subf %30, %29 : vector<128x1xf32>
    %32 = math.exp %31 : vector<128x1xf32>
    %cst_24 = arith.constant 1.000000e+00 : f32
    %33 = vector.broadcast %cst_24 : f32 to vector<128x1xf32>
    %34 = arith.addf %33, %32 : vector<128x1xf32>
    %35 = tpu.reciprocal %34 {approx = true} : vector<128x1xf32> -> vector<128x1xf32>
    %c0_25 = arith.constant 0 : index
    %c0_26 = arith.constant 0 : index
    %36 = vector.load %arg10[%c0_25, %c0_26] : memref<128x1xf32, #tpu.memory_space<vmem>>, vector<128x1xf32>
    tpu.vector_store %arg10[%c0_25, %c0_26], %35 {strides = array<i32>} : memref<128x1xf32, #tpu.memory_space<vmem>>, vector<128x1xf32>,
    return
  }
  func.func @transform_0(%arg0: i32) -> (i32, i32) {
    %c0_i32 = arith.constant 0 : i32
    %c0_i32_0 = arith.constant 0 : i32
    return %arg0, %c0_i32 : i32, i32
  }
  func.func @transform_1(%arg0: i32) -> (i32, i32) {
    %c0_i32 = arith.constant 0 : i32
    %c0_i32_0 = arith.constant 0 : i32
    %c0_i32_1 = arith.constant 0 : i32
    return %c0_i32, %c0_i32_0 : i32, i32
  }
  func.func @transform_2(%arg0: i32) -> (i32, i32) {
    %c0_i32 = arith.constant 0 : i32
    %c0_i32_0 = arith.constant 0 : i32
    %c0_i32_1 = arith.constant 0 : i32
    return %c0_i32, %c0_i32_0 : i32, i32
  }
  func.func @transform_3(%arg0: i32) -> (i32, i32) {
    %c0_i32 = arith.constant 0 : i32
    %c0_i32_0 = arith.constant 0 : i32
    %c0_i32_1 = arith.constant 0 : i32
    return %c0_i32, %c0_i32_0 : i32, i32
  }
  func.func @transform_4(%arg0: i32) -> (i32, i32) {
    %c0_i32 = arith.constant 0 : i32
    %c0_i32_0 = arith.constant 0 : i32
    %c0_i32_1 = arith.constant 0 : i32
    return %c0_i32, %c0_i32_0 : i32, i32
  }
  func.func @transform_5(%arg0: i32) -> (i32, i32) {
    %c0_i32 = arith.constant 0 : i32
    %c0_i32_0 = arith.constant 0 : i32
    %c0_i32_1 = arith.constant 0 : i32
    return %c0_i32, %c0_i32_0 : i32, i32
  }
  func.func @transform_6(%arg0: i32) -> (i32, i32) {
    %c0_i32 = arith.constant 0 : i32
    %c0_i32_0 = arith.constant 0 : i32
    %c0_i32_1 = arith.constant 0 : i32
    return %c0_i32, %c0_i32_0 : i32, i32
  }
  func.func @transform_7(%arg0: i32) -> (i32, i32) {
    %c0_i32 = arith.constant 0 : i32
    %c0_i32_0 = arith.constant 0 : i32
    %c0_i32_1 = arith.constant 0 : i32
    return %c0_i32, %c0_i32_0 : i32, i32
  }
  func.func @transform_8(%arg0: i32) -> (i32, i32) {
    %c0_i32 = arith.constant 0 : i32
    %c0_i32_0 = arith.constant 0 : i32
    %c0_i32_1 = arith.constant 0 : i32
    return %c0_i32, %c0_i32_0 : i32, i32
  }
  func.func @transform_9(%arg0: i32) -> (i32, i32) {
    %c0_i32 = arith.constant 0 : i32
    %c0_i32_0 = arith.constant 0 : i32
    return %arg0, %c0_i32 : i32, i32
  }
}

</mosaic_0001>

<llo_original>
// kernel: tpu_custom_call.1
$region0: #{tpu_custom_call.1}
  #allocation0 [shape = 'u32[]', space=smem, size = 0x4, offset = 0x4, fixed_abs, tag = 'smem constant byte address 0x4 - core index']
  #allocation1 [shape = 'u32[72,128]{1,0:T(1,128)}', space=vmem, size = 0x9000, scoped, tag = 'internal scratch']
  #allocation2 [shape = 'f32[1,1]{1,0:T(1,128)S(1)}', space=vmem, size = 0x200, scoped, tag = 'scoped memory for tpu_custom_call.1']
  %s0 = inlined_call_operand.vmem [shape: f32[128,50], index: 0, kind: input, shape index: {}]
  %s1 = inlined_call_operand.vmem [shape: f32[50,32], index: 1, kind: input, shape index: {}]
  %s2 = inlined_call_operand.vmem [shape: f32[1,32], index: 2, kind: input, shape index: {}]
  %s3 = inlined_call_operand.vmem [shape: f32[32,32], index: 3, kind: input, shape index: {}]
  %s4 = inlined_call_operand.vmem [shape: f32[1,32], index: 4, kind: input, shape index: {}]
  %s5 = inlined_call_operand.vmem [shape: f32[32,16], index: 5, kind: input, shape index: {}]
  %s6 = inlined_call_operand.vmem [shape: f32[1,16], index: 6, kind: input, shape index: {}]
  %s7 = inlined_call_operand.vmem [shape: f32[1,16], index: 7, kind: input, shape index: {}]
  %s8 = inlined_call_operand.<no memory space> [shape: f32[1,1], index: 8, kind: input, shape index: {}]
  %s9 = inlined_call_operand.vmem [shape: f32[128,1], index: 9, kind: output, shape index: {}]
  %s10 = sld [smem:[#allocation0]]
  $region46: #{tpu_custom_call.1} parent=0
    _
  %s12 = ssub.s32 1, %s10
  %s13 = scalar_select 0, %s12, %s10
  %v14 = vstv %s8
  %15 = vst [vmem:[#allocation2] sm:$0x1] %v14
  // Predicated region
  $region2: #{tpu_custom_call.1} parent=0 // pred_check
    _
  $region3: #{tpu_custom_call.1} parent=0 // pred_check_branch
    %17 = sbr.rel (0) target = $region5
  $region4: #{tpu_custom_call.1} parent=0 // pred_region
    _
  $region5: #{tpu_custom_call.1} parent=0 // pred_fallthru
    _
  // Predicated region
  $region6: #{tpu_custom_call.1} parent=0 // pred_check
    _
  $region7: #{tpu_custom_call.1} parent=0 // pred_check_branch
    %19 = sbr.rel (0) target = $region9
  $region8: #{tpu_custom_call.1} parent=0 // pred_region
    _
  $region9: #{tpu_custom_call.1} parent=0 // pred_fallthru
    _
  // Predicated region
  $region10: #{tpu_custom_call.1} parent=0 // pred_check
    _
  $region11: #{tpu_custom_call.1} parent=0 // pred_check_branch
    %21 = sbr.rel (0) target = $region13
  $region12: #{tpu_custom_call.1} parent=0 // pred_region
    _
  $region13: #{tpu_custom_call.1} parent=0 // pred_fallthru
    _
  // Predicated region
  $region14: #{tpu_custom_call.1} parent=0 // pred_check
    _
  $region15: #{tpu_custom_call.1} parent=0 // pred_check_branch
    %23 = sbr.rel (0) target = $region17
  $region16: #{tpu_custom_call.1} parent=0 // pred_region
    _
  $region17: #{tpu_custom_call.1} parent=0 // pred_fallthru
    _
  // Predicated region
  $region18: #{tpu_custom_call.1} parent=0 // pred_check
    _
  $region19: #{tpu_custom_call.1} parent=0 // pred_check_branch
    %25 = sbr.rel (0) target = $region21
  $region20: #{tpu_custom_call.1} parent=0 // pred_region
    _
  $region21: #{tpu_custom_call.1} parent=0 // pred_fallthru
    _
  // Predicated region
  $region22: #{tpu_custom_call.1} parent=0 // pred_check
    _
  $region23: #{tpu_custom_call.1} parent=0 // pred_check_branch
    %27 = sbr.rel (0) target = $region25
  $region24: #{tpu_custom_call.1} parent=0 // pred_region
    _
  $region25: #{tpu_custom_call.1} parent=0 // pred_fallthru
    _
  // Predicated region
  $region26: #{tpu_custom_call.1} parent=0 // pred_check
    _
  $region27: #{tpu_custom_call.1} parent=0 // pred_check_branch
    %29 = sbr.rel (0) target = $region29
  $region28: #{tpu_custom_call.1} parent=0 // pred_region
    _
  $region29: #{tpu_custom_call.1} parent=0 // pred_fallthru
    _
  // Predicated region
  $region30: #{tpu_custom_call.1} parent=0 // pred_check
    _
  $region31: #{tpu_custom_call.1} parent=0 // pred_check_branch
    %31 = sbr.rel (0) target = $region33
  $region32: #{tpu_custom_call.1} parent=0 // pred_region
    _
  $region33: #{tpu_custom_call.1} parent=0 // pred_fallthru
    _
  // Predicated region
  $region34: #{tpu_custom_call.1} parent=0 // pred_check
    _
  $region35: #{tpu_custom_call.1} parent=0 // pred_check_branch
    %33 = sbr.rel (0) target = $region37
  $region36: #{tpu_custom_call.1} parent=0 // pred_region
    _
  $region37: #{tpu_custom_call.1} parent=0 // pred_fallthru
    _
  %v34 = vld [vmem:[%s0] sm:$0xff]
  %v35 = vld [vmem:[%s0 + $0x8] sm:$0xff]
  %v36 = vld [vmem:[%s0 + $0x10] sm:$0xff]
  %v37 = vld [vmem:[%s0 + $0x18] sm:$0xff]
  %v38 = vld [vmem:[%s0 + $0x20] sm:$0xff]
  %v39 = vld [vmem:[%s0 + $0x28] sm:$0xff]
  %v40 = vld [vmem:[%s0 + $0x30] sm:$0xff]
  %v41 = vld [vmem:[%s0 + $0x38] sm:$0xff]
  %v42 = vld [vmem:[%s0 + $0x40] sm:$0xff]
  %v43 = vld [vmem:[%s0 + $0x48] sm:$0xff]
  %v44 = vld [vmem:[%s0 + $0x50] sm:$0xff]
  %v45 = vld [vmem:[%s0 + $0x58] sm:$0xff]
  %v46 = vld [vmem:[%s0 + $0x60] sm:$0xff]
  %v47 = vld [vmem:[%s0 + $0x68] sm:$0xff]
  %v48 = vld [vmem:[%s0 + $0x70] sm:$0xff]
  %v49 = vld [vmem:[%s0 + $0x78] sm:$0xff]
  %v50 = vld [vmem:[%s1] sm:$0xff]
  %v51 = vld [vmem:[%s1 + $0x8] sm:$0xff]
  %v52 = vld [vmem:[%s1 + $0x10] sm:$0xff]
  %v53 = vld [vmem:[%s1 + $0x18] sm:$0xff]
  %v54 = vld [vmem:[%s1 + $0x20] sm:$0xff]
  %v55 = vld [vmem:[%s1 + $0x28] sm:$0xff]
  %v56 = vld [vmem:[%s1 + $0x30] sm:$0x3]
  %v57 = vld [vmem:[%s2] sm:$0x1]
  %v59 = vperm.slane %v57, 0
  %vm61 = vcmask 408576
  %v63 = vsel %vm61, %v34, 0
  %v66 = vsel %vm61, %v35, 0
  %v69 = vsel %vm61, %v36, 0
  %v72 = vsel %vm61, %v37, 0
  %v75 = vsel %vm61, %v38, 0
  %v78 = vsel %vm61, %v39, 0
  %v81 = vsel %vm61, %v40, 0
  %v84 = vsel %vm61, %v41, 0
  %v87 = vsel %vm61, %v42, 0
  %v90 = vsel %vm61, %v43, 0
  %v93 = vsel %vm61, %v44, 0
  %v96 = vsel %vm61, %v45, 0
  %v99 = vsel %vm61, %v46, 0
  %v102 = vsel %vm61, %v47, 0
  %v105 = vsel %vm61, %v48, 0
  %v108 = vsel %vm61, %v49, 0
  %vm110 = vcmask 1041408
  %v112 = vsel %vm110, %v56, 0
  %114 = vmatpush.msra.mxu0 0.0
  %115 = vmatpush.msra.mxu0 0.0
  %116 = vmatpush.msra.mxu0 0.0
  %117 = vmatpush.msra.mxu0 0.0
  %118 = vmatpush.msra.mxu0 0.0
  %119 = vmatpush.msra.mxu0 0.0
  %120 = vmatpush.msra.mxu0 0.0
  %121 = vmatpush.msra.mxu0 0.0
  %122 = vmatpush.msra.mxu0 0.0
  %123 = vmatpush.msra.mxu0 %v112
  %124 = vmatpush.msra.mxu0 %v55
  %125 = vmatpush.msra.mxu0 %v54
  %126 = vmatpush.msra.mxu0 %v53
  %127 = vmatpush.msra.mxu0 %v52
  %128 = vmatpush.msra.mxu0 %v51
  %129 = vmatpush.msra.mxu0 %v50
  %130 = vmatmul.f32.gmra.mxu0 %v63
  %v131 = vpop.f32.mrf.mxu0
  %v132 = vadd.f32 %v59, %v131
  %133 = vmatmul.f32.gmra.mxu0 %v66
  %v134 = vpop.f32.mrf.mxu0
  %v135 = vadd.f32 %v59, %v134
  %136 = vmatmul.f32.gmra.mxu0 %v69
  %v137 = vpop.f32.mrf.mxu0
  %v138 = vadd.f32 %v59, %v137
  %139 = vmatmul.f32.gmra.mxu0 %v72
  %v140 = vpop.f32.mrf.mxu0
  %v141 = vadd.f32 %v59, %v140
  %142 = vmatmul.f32.gmra.mxu0 %v75
  %v143 = vpop.f32.mrf.mxu0
  %v144 = vadd.f32 %v59, %v143
  %145 = vmatmul.f32.gmra.mxu0 %v78
  %v146 = vpop.f32.mrf.mxu0
  %v147 = vadd.f32 %v59, %v146
  %148 = vmatmul.f32.gmra.mxu0 %v81
  %v149 = vpop.f32.mrf.mxu0
  %v150 = vadd.f32 %v59, %v149
  %151 = vmatmul.f32.gmra.mxu0 %v84
  %v152 = vpop.f32.mrf.mxu0
  %v153 = vadd.f32 %v59, %v152
  %154 = vmatmul.f32.gmra.mxu0 %v87
  %v155 = vpop.f32.mrf.mxu0
  %v156 = vadd.f32 %v59, %v155
  %157 = vmatmul.f32.gmra.mxu0 %v90
  %v158 = vpop.f32.mrf.mxu0
  %v159 = vadd.f32 %v59, %v158
  %160 = vmatmul.f32.gmra.mxu0 %v93
  %v161 = vpop.f32.mrf.mxu0
  %v162 = vadd.f32 %v59, %v161
  %163 = vmatmul.f32.gmra.mxu0 %v96
  %v164 = vpop.f32.mrf.mxu0
  %v165 = vadd.f32 %v59, %v164
  %166 = vmatmul.f32.gmra.mxu0 %v99
  %v167 = vpop.f32.mrf.mxu0
  %v168 = vadd.f32 %v59, %v167
  %169 = vmatmul.f32.gmra.mxu0 %v102
  %v170 = vpop.f32.mrf.mxu0
  %v171 = vadd.f32 %v59, %v170
  %172 = vmatmul.f32.gmra.mxu0 %v105
  %v173 = vpop.f32.mrf.mxu0
  %v174 = vadd.f32 %v59, %v173
  %175 = vmatmul.f32.gmra.mxu0 %v108
  %v176 = vpop.f32.mrf.mxu0
  %v177 = vadd.f32 %v59, %v176
  %178 = vdwg.mxu0
  %v179 = vmax.f32 %v132, 0.0
  %v180 = vmax.f32 %v135, 0.0
  %v181 = vmax.f32 %v138, 0.0
  %v182 = vmax.f32 %v141, 0.0
  %v183 = vmax.f32 %v144, 0.0
  %v184 = vmax.f32 %v147, 0.0
  %v185 = vmax.f32 %v150, 0.0
  %v186 = vmax.f32 %v153, 0.0
  %v187 = vmax.f32 %v156, 0.0
  %v188 = vmax.f32 %v159, 0.0
  %v189 = vmax.f32 %v162, 0.0
  %v190 = vmax.f32 %v165, 0.0
  %v191 = vmax.f32 %v168, 0.0
  %v192 = vmax.f32 %v171, 0.0
  %v193 = vmax.f32 %v174, 0.0
  %v194 = vmax.f32 %v177, 0.0
  %v195 = vld [vmem:[%s3] sm:$0xff]
  %v196 = vld [vmem:[%s3 + $0x8] sm:$0xff]
  %v197 = vld [vmem:[%s3 + $0x10] sm:$0xff]
  %v198 = vld [vmem:[%s3 + $0x18] sm:$0xff]
  %v199 = vld [vmem:[%s4] sm:$0x1]
  %v201 = vperm.slane %v199, 0
  %vm203 = vcmask 261120
  %v205 = vsel %vm203, %v179, 0
  %v208 = vsel %vm203, %v180, 0
  %v211 = vsel %vm203, %v181, 0
  %v214 = vsel %vm203, %v182, 0
  %v217 = vsel %vm203, %v183, 0
  %v220 = vsel %vm203, %v184, 0
  %v223 = vsel %vm203, %v185, 0
  %v226 = vsel %vm203, %v186, 0
  %v229 = vsel %vm203, %v187, 0
  %v232 = vsel %vm203, %v188, 0
  %v235 = vsel %vm203, %v189, 0
  %v238 = vsel %vm203, %v190, 0
  %v241 = vsel %vm203, %v191, 0
  %v244 = vsel %vm203, %v192, 0
  %v247 = vsel %vm203, %v193, 0
  %v250 = vsel %vm203, %v194, 0
  %252 = vmatpush.msra.mxu0 0.0
  %253 = vmatpush.msra.mxu0 0.0
  %254 = vmatpush.msra.mxu0 0.0
  %255 = vmatpush.msra.mxu0 0.0
  %256 = vmatpush.msra.mxu0 0.0
  %257 = vmatpush.msra.mxu0 0.0
  %258 = vmatpush.msra.mxu0 0.0
  %259 = vmatpush.msra.mxu0 0.0
  %260 = vmatpush.msra.mxu0 0.0
  %261 = vmatpush.msra.mxu0 0.0
  %262 = vmatpush.msra.mxu0 0.0
  %263 = vmatpush.msra.mxu0 0.0
  %264 = vmatpush.msra.mxu0 %v198
  %265 = vmatpush.msra.mxu0 %v197
  %266 = vmatpush.msra.mxu0 %v196
  %267 = vmatpush.msra.mxu0 %v195
  %268 = vmatmul.f32.gmra.mxu0 %v205
  %v269 = vpop.f32.mrf.mxu0
  %v270 = vadd.f32 %v201, %v269
  %271 = vmatmul.f32.gmra.mxu0 %v208
  %v272 = vpop.f32.mrf.mxu0
  %v273 = vadd.f32 %v201, %v272
  %274 = vmatmul.f32.gmra.mxu0 %v211
  %v275 = vpop.f32.mrf.mxu0
  %v276 = vadd.f32 %v201, %v275
  %277 = vmatmul.f32.gmra.mxu0 %v214
  %v278 = vpop.f32.mrf.mxu0
  %v279 = vadd.f32 %v201, %v278
  %280 = vmatmul.f32.gmra.mxu0 %v217
  %v281 = vpop.f32.mrf.mxu0
  %v282 = vadd.f32 %v201, %v281
  %283 = vmatmul.f32.gmra.mxu0 %v220
  %v284 = vpop.f32.mrf.mxu0
  %v285 = vadd.f32 %v201, %v284
  %286 = vmatmul.f32.gmra.mxu0 %v223
  %v287 = vpop.f32.mrf.mxu0
  %v288 = vadd.f32 %v201, %v287
  %289 = vmatmul.f32.gmra.mxu0 %v226
  %v290 = vpop.f32.mrf.mxu0
  %v291 = vadd.f32 %v201, %v290
  %292 = vmatmul.f32.gmra.mxu0 %v229
  %v293 = vpop.f32.mrf.mxu0
  %v294 = vadd.f32 %v201, %v293
  %295 = vmatmul.f32.gmra.mxu0 %v232
  %v296 = vpop.f32.mrf.mxu0
  %v297 = vadd.f32 %v201, %v296
  %298 = vmatmul.f32.gmra.mxu0 %v235
  %v299 = vpop.f32.mrf.mxu0
  %v300 = vadd.f32 %v201, %v299
  %301 = vmatmul.f32.gmra.mxu0 %v238
  %v302 = vpop.f32.mrf.mxu0
  %v303 = vadd.f32 %v201, %v302
  %304 = vmatmul.f32.gmra.mxu0 %v241
  %v305 = vpop.f32.mrf.mxu0
  %v306 = vadd.f32 %v201, %v305
  %307 = vmatmul.f32.gmra.mxu0 %v244
  %v308 = vpop.f32.mrf.mxu0
  %v309 = vadd.f32 %v201, %v308
  %310 = vmatmul.f32.gmra.mxu0 %v247
  %v311 = vpop.f32.mrf.mxu0
  %v312 = vadd.f32 %v201, %v311
  %313 = vmatmul.f32.gmra.mxu0 %v250
  %v314 = vpop.f32.mrf.mxu0
  %v315 = vadd.f32 %v201, %v314
  %316 = vdwg.mxu0
  %v317 = vmax.f32 %v270, 0.0
  %v318 = vmax.f32 %v273, 0.0
  %v319 = vmax.f32 %v276, 0.0
  %v320 = vmax.f32 %v279, 0.0
  %v321 = vmax.f32 %v282, 0.0
  %v322 = vmax.f32 %v285, 0.0
  %v323 = vmax.f32 %v288, 0.0
  %v324 = vmax.f32 %v291, 0.0
  %v325 = vmax.f32 %v294, 0.0
  %v326 = vmax.f32 %v297, 0.0
  %v327 = vmax.f32 %v300, 0.0
  %v328 = vmax.f32 %v303, 0.0
  %v329 = vmax.f32 %v306, 0.0
  %v330 = vmax.f32 %v309, 0.0
  %v331 = vmax.f32 %v312, 0.0
  %v332 = vmax.f32 %v315, 0.0
  %v333 = vld [vmem:[%s5] sm:$0xff]
  %v334 = vld [vmem:[%s5 + $0x8] sm:$0xff]
  %v335 = vld [vmem:[%s5 + $0x10] sm:$0xff]
  %v336 = vld [vmem:[%s5 + $0x18] sm:$0xff]
  %v337 = vld [vmem:[%s6] sm:$0x1]
  %v339 = vperm.slane %v337, 0
  %v342 = vsel %vm203, %v317, 0
  %v345 = vsel %vm203, %v318, 0
  %v348 = vsel %vm203, %v319, 0
  %v351 = vsel %vm203, %v320, 0
  %v354 = vsel %vm203, %v321, 0
  %v357 = vsel %vm203, %v322, 0
  %v360 = vsel %vm203, %v323, 0
  %v363 = vsel %vm203, %v324, 0
  %v366 = vsel %vm203, %v325, 0
  %v369 = vsel %vm203, %v326, 0
  %v372 = vsel %vm203, %v327, 0
  %v375 = vsel %vm203, %v328, 0
  %v378 = vsel %vm203, %v329, 0
  %v381 = vsel %vm203, %v330, 0
  %v384 = vsel %vm203, %v331, 0
  %v387 = vsel %vm203, %v332, 0
  %389 = vmatpush.msra.mxu0 0.0
  %390 = vmatpush.msra.mxu0 0.0
  %391 = vmatpush.msra.mxu0 0.0
  %392 = vmatpush.msra.mxu0 0.0
  %393 = vmatpush.msra.mxu0 0.0
  %394 = vmatpush.msra.mxu0 0.0
  %395 = vmatpush.msra.mxu0 0.0
  %396 = vmatpush.msra.mxu0 0.0
  %397 = vmatpush.msra.mxu0 0.0
  %398 = vmatpush.msra.mxu0 0.0
  %399 = vmatpush.msra.mxu0 0.0
  %400 = vmatpush.msra.mxu0 0.0
  %401 = vmatpush.msra.mxu0 %v336
  %402 = vmatpush.msra.mxu0 %v335
  %403 = vmatpush.msra.mxu0 %v334
  %404 = vmatpush.msra.mxu0 %v333
  %405 = vmatmul.f32.gmra.mxu0 %v342
  %v406 = vpop.f32.mrf.mxu0
  %v407 = vadd.f32 %v339, %v406
  %408 = vmatmul.f32.gmra.mxu0 %v345
  %v409 = vpop.f32.mrf.mxu0
  %v410 = vadd.f32 %v339, %v409
  %411 = vmatmul.f32.gmra.mxu0 %v348
  %v412 = vpop.f32.mrf.mxu0
  %v413 = vadd.f32 %v339, %v412
  %414 = vmatmul.f32.gmra.mxu0 %v351
  %v415 = vpop.f32.mrf.mxu0
  %v416 = vadd.f32 %v339, %v415
  %417 = vmatmul.f32.gmra.mxu0 %v354
  %v418 = vpop.f32.mrf.mxu0
  %v419 = vadd.f32 %v339, %v418
  %420 = vmatmul.f32.gmra.mxu0 %v357
  %v421 = vpop.f32.mrf.mxu0
  %v422 = vadd.f32 %v339, %v421
  %423 = vmatmul.f32.gmra.mxu0 %v360
  %v424 = vpop.f32.mrf.mxu0
  %v425 = vadd.f32 %v339, %v424
  %426 = vmatmul.f32.gmra.mxu0 %v363
  %v427 = vpop.f32.mrf.mxu0
  %v428 = vadd.f32 %v339, %v427
  %429 = vmatmul.f32.gmra.mxu0 %v366
  %v430 = vpop.f32.mrf.mxu0
  %v431 = vadd.f32 %v339, %v430
  %432 = vmatmul.f32.gmra.mxu0 %v369
  %v433 = vpop.f32.mrf.mxu0
  %v434 = vadd.f32 %v339, %v433
  %435 = vmatmul.f32.gmra.mxu0 %v372
  %v436 = vpop.f32.mrf.mxu0
  %v437 = vadd.f32 %v339, %v436
  %438 = vmatmul.f32.gmra.mxu0 %v375
  %v439 = vpop.f32.mrf.mxu0
  %v440 = vadd.f32 %v339, %v439
  %441 = vmatmul.f32.gmra.mxu0 %v378
  %v442 = vpop.f32.mrf.mxu0
  %v443 = vadd.f32 %v339, %v442
  %444 = vmatmul.f32.gmra.mxu0 %v381
  %v445 = vpop.f32.mrf.mxu0
  %v446 = vadd.f32 %v339, %v445
  %447 = vmatmul.f32.gmra.mxu0 %v384
  %v448 = vpop.f32.mrf.mxu0
  %v449 = vadd.f32 %v339, %v448
  %450 = vmatmul.f32.gmra.mxu0 %v387
  %v451 = vpop.f32.mrf.mxu0
  %v452 = vadd.f32 %v339, %v451
  %453 = vdwg.mxu0
  %v454 = vmax.f32 %v407, 0.0
  %v455 = vmax.f32 %v410, 0.0
  %v456 = vmax.f32 %v413, 0.0
  %v457 = vmax.f32 %v416, 0.0
  %v458 = vmax.f32 %v419, 0.0
  %v459 = vmax.f32 %v422, 0.0
  %v460 = vmax.f32 %v425, 0.0
  %v461 = vmax.f32 %v428, 0.0
  %v462 = vmax.f32 %v431, 0.0
  %v463 = vmax.f32 %v434, 0.0
  %v464 = vmax.f32 %v437, 0.0
  %v465 = vmax.f32 %v440, 0.0
  %v466 = vmax.f32 %v443, 0.0
  %v467 = vmax.f32 %v446, 0.0
  %v468 = vmax.f32 %v449, 0.0
  %v469 = vmax.f32 %v452, 0.0
  %v470 = vld [vmem:[%s7] sm:$0x1]
  %v472 = vperm.slane %v470, 0
  %v474 = vmul.f32 %v454, %v472
  %v475 = vmul.f32 %v455, %v472
  %v476 = vmul.f32 %v456, %v472
  %v477 = vmul.f32 %v457, %v472
  %v478 = vmul.f32 %v458, %v472
  %v479 = vmul.f32 %v459, %v472
  %v480 = vmul.f32 %v460, %v472
  %v481 = vmul.f32 %v461, %v472
  %v482 = vmul.f32 %v462, %v472
  %v483 = vmul.f32 %v463, %v472
  %v484 = vmul.f32 %v464, %v472
  %v485 = vmul.f32 %v465, %v472
  %v486 = vmul.f32 %v466, %v472
  %v487 = vmul.f32 %v467, %v472
  %v488 = vmul.f32 %v468, %v472
  %v489 = vmul.f32 %v469, %v472
  %vm490 = vcmask 130048
  %v491 = vsel %vm490, %v474, 0.0
  %492 = vadd.xlane.f32.xlu0 %v491
  %v493 = vpop.xlane.xlu0 %492
  %v494 = vsel %vm490, %v475, 0.0
  %495 = vadd.xlane.f32.xlu0 %v494
  %v496 = vpop.xlane.xlu0 %495
  %v497 = vsel %vm490, %v476, 0.0
  %498 = vadd.xlane.f32.xlu0 %v497
  %v499 = vpop.xlane.xlu0 %498
  %v500 = vsel %vm490, %v477, 0.0
  %501 = vadd.xlane.f32.xlu0 %v500
  %v502 = vpop.xlane.xlu0 %501
  %v503 = vsel %vm490, %v478, 0.0
  %504 = vadd.xlane.f32.xlu0 %v503
  %v505 = vpop.xlane.xlu0 %504
  %v506 = vsel %vm490, %v479, 0.0
  %507 = vadd.xlane.f32.xlu0 %v506
  %v508 = vpop.xlane.xlu0 %507
  %v509 = vsel %vm490, %v480, 0.0
  %510 = vadd.xlane.f32.xlu0 %v509
  %v511 = vpop.xlane.xlu0 %510
  %v512 = vsel %vm490, %v481, 0.0
  %513 = vadd.xlane.f32.xlu0 %v512
  %v514 = vpop.xlane.xlu0 %513
  %v515 = vsel %vm490, %v482, 0.0
  %516 = vadd.xlane.f32.xlu0 %v515
  %v517 = vpop.xlane.xlu0 %516
  %v518 = vsel %vm490, %v483, 0.0
  %519 = vadd.xlane.f32.xlu0 %v518
  %v520 = vpop.xlane.xlu0 %519
  %v521 = vsel %vm490, %v484, 0.0
  %522 = vadd.xlane.f32.xlu0 %v521
  %v523 = vpop.xlane.xlu0 %522
  %v524 = vsel %vm490, %v485, 0.0
  %525 = vadd.xlane.f32.xlu0 %v524
  %v526 = vpop.xlane.xlu0 %525
  %v527 = vsel %vm490, %v486, 0.0
  %528 = vadd.xlane.f32.xlu0 %v527
  %v529 = vpop.xlane.xlu0 %528
  %v530 = vsel %vm490, %v487, 0.0
  %531 = vadd.xlane.f32.xlu0 %v530
  %v532 = vpop.xlane.xlu0 %531
  %v533 = vsel %vm490, %v488, 0.0
  %534 = vadd.xlane.f32.xlu0 %v533
  %v535 = vpop.xlane.xlu0 %534
  %v536 = vsel %vm490, %v489, 0.0
  %537 = vadd.xlane.f32.xlu0 %v536
  %v538 = vpop.xlane.xlu0 %537
  %v539 = vld [vmem:[#allocation2] sm:$0x1]
  %v541 = vperm.slane %v539, 0
  %v543 = vadd.f32 %v493, %v541
  %v544 = vadd.f32 %v496, %v541
  %v545 = vadd.f32 %v499, %v541
  %v546 = vadd.f32 %v502, %v541
  %v547 = vadd.f32 %v505, %v541
  %v548 = vadd.f32 %v508, %v541
  %v549 = vadd.f32 %v511, %v541
  %v550 = vadd.f32 %v514, %v541
  %v551 = vadd.f32 %v517, %v541
  %v552 = vadd.f32 %v520, %v541
  %v553 = vadd.f32 %v523, %v541
  %v554 = vadd.f32 %v526, %v541
  %v555 = vadd.f32 %v529, %v541
  %v556 = vadd.f32 %v532, %v541
  %v557 = vadd.f32 %v535, %v541
  %v558 = vadd.f32 %v538, %v541
  %v559 = vsub.f32 0.0, %v543
  %v560 = vsub.f32 0.0, %v544
  %v561 = vsub.f32 0.0, %v545
  %v562 = vsub.f32 0.0, %v546
  %v563 = vsub.f32 0.0, %v547
  %v564 = vsub.f32 0.0, %v548
  %v565 = vsub.f32 0.0, %v549
  %v566 = vsub.f32 0.0, %v550
  %v567 = vsub.f32 0.0, %v551
  %v568 = vsub.f32 0.0, %v552
  %v569 = vsub.f32 0.0, %v553
  %v570 = vsub.f32 0.0, %v554
  %v571 = vsub.f32 0.0, %v555
  %v572 = vsub.f32 0.0, %v556
  %v573 = vsub.f32 0.0, %v557
  %v574 = vsub.f32 0.0, %v558
  %v575 = vmul.f32 %v559, 1.442695
  %v576 = vpow.pop %v575
  %v577 = vmul.f32 %v560, 1.442695
  %v578 = vpow.pop %v577
  %v579 = vmul.f32 %v561, 1.442695
  %v580 = vpow.pop %v579
  %v581 = vmul.f32 %v562, 1.442695
  %v582 = vpow.pop %v581
  %v583 = vmul.f32 %v563, 1.442695
  %v584 = vpow.pop %v583
  %v585 = vmul.f32 %v564, 1.442695
  %v586 = vpow.pop %v585
  %v587 = vmul.f32 %v565, 1.442695
  %v588 = vpow.pop %v587
  %v589 = vmul.f32 %v566, 1.442695
  %v590 = vpow.pop %v589
  %v591 = vmul.f32 %v567, 1.442695
  %v592 = vpow.pop %v591
  %v593 = vmul.f32 %v568, 1.442695
  %v594 = vpow.pop %v593
  %v595 = vmul.f32 %v569, 1.442695
  %v596 = vpow.pop %v595
  %v597 = vmul.f32 %v570, 1.442695
  %v598 = vpow.pop %v597
  %v599 = vmul.f32 %v571, 1.442695
  %v600 = vpow.pop %v599
  %v601 = vmul.f32 %v572, 1.442695
  %v602 = vpow.pop %v601
  %v603 = vmul.f32 %v573, 1.442695
  %v604 = vpow.pop %v603
  %v605 = vmul.f32 %v574, 1.442695
  %v606 = vpow.pop %v605
  %v607 = vadd.f32 %v576, 1.0
  %v608 = vadd.f32 %v578, 1.0
  %v609 = vadd.f32 %v580, 1.0
  %v610 = vadd.f32 %v582, 1.0
  %v611 = vadd.f32 %v584, 1.0
  %v612 = vadd.f32 %v586, 1.0
  %v613 = vadd.f32 %v588, 1.0
  %v614 = vadd.f32 %v590, 1.0
  %v615 = vadd.f32 %v592, 1.0
  %v616 = vadd.f32 %v594, 1.0
  %v617 = vadd.f32 %v596, 1.0
  %v618 = vadd.f32 %v598, 1.0
  %v619 = vadd.f32 %v600, 1.0
  %v620 = vadd.f32 %v602, 1.0
  %v621 = vadd.f32 %v604, 1.0
  %v622 = vadd.f32 %v606, 1.0
  %v623 = vrcp.pop %v607
  %v624 = vrcp.pop %v608
  %v625 = vrcp.pop %v609
  %v626 = vrcp.pop %v610
  %v627 = vrcp.pop %v611
  %v628 = vrcp.pop %v612
  %v629 = vrcp.pop %v613
  %v630 = vrcp.pop %v614
  %v631 = vrcp.pop %v615
  %v632 = vrcp.pop %v616
  %v633 = vrcp.pop %v617
  %v634 = vrcp.pop %v618
  %v635 = vrcp.pop %v619
  %v636 = vrcp.pop %v620
  %v637 = vrcp.pop %v621
  %v638 = vrcp.pop %v622
  %vm639 = vcmask 7168
  %640 = vst.msk [vmem:[%s9] sm:$0xff] %vm639, %v623
  %641 = vst.msk [vmem:[%s9 + $0x8] sm:$0xff] %vm639, %v624
  %642 = vst.msk [vmem:[%s9 + $0x10] sm:$0xff] %vm639, %v625
  %643 = vst.msk [vmem:[%s9 + $0x18] sm:$0xff] %vm639, %v626
  %644 = vst.msk [vmem:[%s9 + $0x20] sm:$0xff] %vm639, %v627
  %645 = vst.msk [vmem:[%s9 + $0x28] sm:$0xff] %vm639, %v628
  %646 = vst.msk [vmem:[%s9 + $0x30] sm:$0xff] %vm639, %v629
  %647 = vst.msk [vmem:[%s9 + $0x38] sm:$0xff] %vm639, %v630
  %648 = vst.msk [vmem:[%s9 + $0x40] sm:$0xff] %vm639, %v631
  %649 = vst.msk [vmem:[%s9 + $0x48] sm:$0xff] %vm639, %v632
  %650 = vst.msk [vmem:[%s9 + $0x50] sm:$0xff] %vm639, %v633
  %651 = vst.msk [vmem:[%s9 + $0x58] sm:$0xff] %vm639, %v634
  %652 = vst.msk [vmem:[%s9 + $0x60] sm:$0xff] %vm639, %v635
  %653 = vst.msk [vmem:[%s9 + $0x68] sm:$0xff] %vm639, %v636
  %654 = vst.msk [vmem:[%s9 + $0x70] sm:$0xff] %vm639, %v637
  %655 = vst.msk [vmem:[%s9 + $0x78] sm:$0xff] %vm639, %v638
  // Predicated region
  $region38: #{tpu_custom_call.1} parent=0 // pred_check
    _
  $region39: #{tpu_custom_call.1} parent=0 // pred_check_branch
    %657 = sbr.rel (0) target = $region41
  $region40: #{tpu_custom_call.1} parent=0 // pred_region
    _
  $region41: #{tpu_custom_call.1} parent=0 // pred_fallthru
    _
  // Predicated region
  $region42: #{tpu_custom_call.1} parent=0 // pred_check
    _
  $region43: #{tpu_custom_call.1} parent=0 // pred_check_branch
    %659 = sbr.rel (0) target = $region45
  $region44: #{tpu_custom_call.1} parent=0 // pred_region
    _
  $region45: #{tpu_custom_call.1} parent=0 // pred_fallthru
    _

</llo_original>
